<compile_context>
chip_gen: v7x
topology: tpu7x:2x2x1
jax: 0.10.0
libtpu: 0.0.40
codegen_flags: <defaults>
</compile_context>

<pallas_src>
import functools
import math

import jax
import jax.numpy as jnp
from jax.experimental import pallas as pl
from jax.experimental.pallas import tpu as pltpu


def _rel_pos_tile_kernel(win_ref, out_ref, *, tile_q, length_k):
    """Expand one query tile of relative-position embeddings.

    win_ref: (tile_q + Lk - 1, d_model) clipped embedding rows for this tile,
             ordered so that output row r needs window rows
             [tile_q - 1 - r, tile_q - 1 - r + Lk).
    out_ref: (tile_q, Lk, d_model) current output tile.

    All slice starts are static -> pure VMEM copies (no MXU / relayout / VPU
    compare work); the binding cost is the pipelined HBM writeback of out_ref.
    """
    for r in range(tile_q):
        s = tile_q - 1 - r                       # static start
        out_ref[r] = win_ref[pl.ds(s, length_k), :]


def relative_positional_embedding(q, kv, embedding, clipping_distance, *, tile_q=None):
    """Pallas equivalent of RelativePositionalEmbedding.forward.

    Args:
      q:  array with q.shape[1] == length_query (content unused, as in torch).
      kv: array with kv.shape[1] == length_key (content unused).
      embedding: (2*clipping_distance + 1, d_model) parameter table.
      clipping_distance: int.
      tile_q: optional query-tile size (default: VMEM-budgeted).

    Returns:
      (length_query, length_key, d_model) embeddings.
    """
    length_q = int(q.shape[1])
    length_k = int(kv.shape[1])
    d_model = int(embedding.shape[-1])
    dtype = embedding.dtype
    itemsize = jnp.dtype(dtype).itemsize

    # --- query-tile size, budgeted against the lane-padded VMEM footprint so
    # the double-buffered output block stays a few MiB (safe on v7x's 64 MiB
    # physical / 32 MiB default-scoped VMEM), while staying big enough to
    # amortize the ~0.35 us per-grid-step overhead.
    lane_padded_d = ((d_model + 127) // 128) * 128
    out_row_bytes = length_k * lane_padded_d * itemsize
    if tile_q is None:
        budget_bytes = 4 * 1024 * 1024           # per output buffer; pipeline double-buffers
        rows_fit = max(1, budget_bytes // max(out_row_bytes, 1))
        if rows_fit >= 8:
            rows_fit = (rows_fit // 8) * 8        # sublane-friendly block height
        tile_q = min(rows_fit, 256)               # cap the static unroll length
    tile_q = max(1, min(int(tile_q), length_q))
    num_tiles = -(-length_q // tile_q)
    window_rows = tile_q + length_k - 1

    # --- tiny per-tile row windows (O((Lq + Lk) * d_model), negligible vs output):
    # window[i, w, :] = embedding[clip(w - tile_q*(i+1) + 1, -c, c) + c]
    # so output row r (global q = i*tile_q + r) of tile i is
    # window[i, tile_q-1-r : tile_q-1-r+Lk]  (holds for partial last tiles too).
    base = length_q - tile_q * (jnp.arange(num_tiles, dtype=jnp.int32) + 1)   # (T,)
    t = jnp.arange(window_rows, dtype=jnp.int32)                              # (W,)
    dist = base[:, None] + t[None, :] - (length_q - 1)                        # (T, W)
    emb_idx = jnp.clip(dist, -clipping_distance, clipping_distance) + clipping_distance
    window = jnp.take(embedding, emb_idx.reshape(-1), axis=0)
    window = window.reshape(num_tiles, window_rows, d_model)

    out_bytes = length_q * length_k * d_model * itemsize
    window_bytes = num_tiles * window_rows * d_model * itemsize

    # Raise the scoped-VMEM limit only if the double-buffered blocks need it.
    sublane_padded_k = ((length_k + 7) // 8) * 8
    block_out_bytes = tile_q * sublane_padded_k * lane_padded_d * itemsize
    block_win_bytes = ((window_rows + 7) // 8) * 8 * lane_padded_d * itemsize
    footprint = 2 * (block_out_bytes + block_win_bytes) + (2 << 20)
    cp_kwargs = dict(dimension_semantics=("parallel",))   # shard Lq tiles across TCs
    if footprint > (32 << 20):
        cp_kwargs["vmem_limit_bytes"] = int(footprint)

    kernel = functools.partial(_rel_pos_tile_kernel, tile_q=tile_q, length_k=length_k)

    return pl.pallas_call(
        kernel,
        out_shape=jax.ShapeDtypeStruct((length_q, length_k, d_model), dtype),
        grid_spec=pltpu.PrefetchScalarGridSpec(
            num_scalar_prefetch=0,
            grid=(num_tiles,),
            in_specs=[
                # One window per query tile; leading dim squeezed, last two
                # dims equal the full array dims (satisfies the (8,128) rule).
                pl.BlockSpec((None, window_rows, d_model), lambda i: (i, 0, 0)),
            ],
            out_specs=pl.BlockSpec((tile_q, length_k, d_model),
                                   lambda i: (i, 0, 0)),
        ),
        compiler_params=pltpu.CompilerParams(**cp_kwargs),
        cost_estimate=pl.CostEstimate(
            flops=0, transcendentals=0,
            bytes_accessed=out_bytes + window_bytes),
    )(window)


def xavier_uniform(key, shape, dtype=jnp.float32):
    """Matches torch.nn.init.xavier_uniform_ for a 2D tensor."""
    fan_out, fan_in = shape  # torch: fan_out = size(0), fan_in = size(1)
    bound = math.sqrt(6.0 / (fan_in + fan_out))
    return jax.random.uniform(key, shape, dtype, minval=-bound, maxval=bound)


def _reference(embedding, length_q, length_k, clipping_distance):
    """Pure-JAX reference of the module's gather semantics."""
    iq = jnp.arange(length_q)
    ik = jnp.arange(length_k)
    dist = ik[None, :] - iq[:, None]
    idx = jnp.clip(dist, -clipping_distance, clipping_distance) + clipping_distance
    return embedding[idx]


if __name__ == "__main__":
    d_model = 32
    clipping_distance = 4
    length_q = 16
    length_k = 24
    batch = 2

    key = jax.random.PRNGKey(0)
    k_emb, k_q, k_kv = jax.random.split(key, 3)

    # Deterministic parameter init (XAVIER_UNIFORM, the module's default).
    embedding = xavier_uniform(k_emb, (2 * clipping_distance + 1, d_model))

    # q / kv: only shape[1] matters; give them plausible (B, L, D) shapes.
    q = jax.random.normal(k_q, (batch, length_q, d_model), jnp.float32)
    kv = jax.random.normal(k_kv, (batch, length_k, d_model), jnp.float32)

    # tile_q=8 -> a 2-step grid, exercising the pipelined multi-tile path.
    out = relative_positional_embedding(q, kv, embedding, clipping_distance, tile_q=8)
    out = jax.block_until_ready(out)
    ref = _reference(embedding, length_q, length_k, clipping_distance)
    assert out.shape == (length_q, length_k, d_model)
    assert bool(jnp.array_equal(out, ref)), "mismatch vs reference gather"

    # Non-divisible lengths: exercises the partial last query tile.
    q2 = jax.random.normal(k_q, (1, 13, d_model), jnp.float32)
    kv2 = jax.random.normal(k_kv, (1, 7, d_model), jnp.float32)
    out2 = relative_positional_embedding(q2, kv2, embedding, clipping_distance, tile_q=8)
    out2 = jax.block_until_ready(out2)
    ref2 = _reference(embedding, 13, 7, clipping_distance)
    assert out2.shape == (13, 7, d_model)
    assert bool(jnp.array_equal(out2, ref2)), "mismatch vs reference gather (partial tile)"

    print("KERNEL_OK")
</pallas_src>

<mosaic_0001>
module attributes {stable_mosaic.version = 11 : i64} {
  func.func @_rel_pos_tile_kernel(%arg0: i32, %arg1: memref<1x31x32xf32, #tpu.memory_space<vmem>>, %arg2: memref<8x24x32xf32, #tpu.memory_space<vmem>>) attributes {dimension_semantics = [#tpu.dimension_semantics<parallel>], iteration_bounds = array<i64: 2>, scalar_prefetch = 0 : i64, scratch_operands = 0 : i64, tpu.core_type = #tpu.core_type<tc>, window_params = [{transform_indices = @transform_0, window_bounds = array<i64: 1, 31, 32>}, {transform_indices = @transform_1, window_bounds = array<i64: 8, 24, 32>}]} {
    %c0 = arith.constant 0 : index
    %c7 = arith.constant 7 : index
    %c0_0 = arith.constant 0 : index
    %0 = vector.load %arg1[%c0, %c7, %c0_0] : memref<1x31x32xf32, #tpu.memory_space<vmem>>, vector<1x24x32xf32>
    %1 = vector.shape_cast %0 : vector<1x24x32xf32> to vector<24x32xf32>
    %c0_1 = arith.constant 0 : index
    %c0_2 = arith.constant 0 : index
    %c0_3 = arith.constant 0 : index
    %2 = vector.load %arg2[%c0_1, %c0_2, %c0_3] : memref<8x24x32xf32, #tpu.memory_space<vmem>>, vector<1x24x32xf32>
    %3 = vector.shape_cast %2 : vector<1x24x32xf32> to vector<24x32xf32>
    %4 = vector.shape_cast %1 : vector<24x32xf32> to vector<1x24x32xf32>
    tpu.vector_store %arg2[%c0_1, %c0_2, %c0_3], %4 {strides = array<i32>} : memref<8x24x32xf32, #tpu.memory_space<vmem>>, vector<1x24x32xf32>,
    %c0_4 = arith.constant 0 : index
    %c6 = arith.constant 6 : index
    %c0_5 = arith.constant 0 : index
    %5 = vector.load %arg1[%c0_4, %c6, %c0_5] : memref<1x31x32xf32, #tpu.memory_space<vmem>>, vector<1x24x32xf32>
    %6 = vector.shape_cast %5 : vector<1x24x32xf32> to vector<24x32xf32>
    %c1 = arith.constant 1 : index
    %c0_6 = arith.constant 0 : index
    %c0_7 = arith.constant 0 : index
    %7 = vector.load %arg2[%c1, %c0_6, %c0_7] : memref<8x24x32xf32, #tpu.memory_space<vmem>>, vector<1x24x32xf32>
    %8 = vector.shape_cast %7 : vector<1x24x32xf32> to vector<24x32xf32>
    %9 = vector.shape_cast %6 : vector<24x32xf32> to vector<1x24x32xf32>
    tpu.vector_store %arg2[%c1, %c0_6, %c0_7], %9 {strides = array<i32>} : memref<8x24x32xf32, #tpu.memory_space<vmem>>, vector<1x24x32xf32>,
    %c0_8 = arith.constant 0 : index
    %c5 = arith.constant 5 : index
    %c0_9 = arith.constant 0 : index
    %10 = vector.load %arg1[%c0_8, %c5, %c0_9] : memref<1x31x32xf32, #tpu.memory_space<vmem>>, vector<1x24x32xf32>
    %11 = vector.shape_cast %10 : vector<1x24x32xf32> to vector<24x32xf32>
    %c2 = arith.constant 2 : index
    %c0_10 = arith.constant 0 : index
    %c0_11 = arith.constant 0 : index
    %12 = vector.load %arg2[%c2, %c0_10, %c0_11] : memref<8x24x32xf32, #tpu.memory_space<vmem>>, vector<1x24x32xf32>
    %13 = vector.shape_cast %12 : vector<1x24x32xf32> to vector<24x32xf32>
    %14 = vector.shape_cast %11 : vector<24x32xf32> to vector<1x24x32xf32>
    tpu.vector_store %arg2[%c2, %c0_10, %c0_11], %14 {strides = array<i32>} : memref<8x24x32xf32, #tpu.memory_space<vmem>>, vector<1x24x32xf32>,
    %c0_12 = arith.constant 0 : index
    %c4 = arith.constant 4 : index
    %c0_13 = arith.constant 0 : index
    %15 = vector.load %arg1[%c0_12, %c4, %c0_13] : memref<1x31x32xf32, #tpu.memory_space<vmem>>, vector<1x24x32xf32>
    %16 = vector.shape_cast %15 : vector<1x24x32xf32> to vector<24x32xf32>
    %c3 = arith.constant 3 : index
    %c0_14 = arith.constant 0 : index
    %c0_15 = arith.constant 0 : index
    %17 = vector.load %arg2[%c3, %c0_14, %c0_15] : memref<8x24x32xf32, #tpu.memory_space<vmem>>, vector<1x24x32xf32>
    %18 = vector.shape_cast %17 : vector<1x24x32xf32> to vector<24x32xf32>
    %19 = vector.shape_cast %16 : vector<24x32xf32> to vector<1x24x32xf32>
    tpu.vector_store %arg2[%c3, %c0_14, %c0_15], %19 {strides = array<i32>} : memref<8x24x32xf32, #tpu.memory_space<vmem>>, vector<1x24x32xf32>,
    %c0_16 = arith.constant 0 : index
    %c3_17 = arith.constant 3 : index
    %c0_18 = arith.constant 0 : index
    %20 = vector.load %arg1[%c0_16, %c3_17, %c0_18] : memref<1x31x32xf32, #tpu.memory_space<vmem>>, vector<1x24x32xf32>
    %21 = vector.shape_cast %20 : vector<1x24x32xf32> to vector<24x32xf32>
    %c4_19 = arith.constant 4 : index
    %c0_20 = arith.constant 0 : index
    %c0_21 = arith.constant 0 : index
    %22 = vector.load %arg2[%c4_19, %c0_20, %c0_21] : memref<8x24x32xf32, #tpu.memory_space<vmem>>, vector<1x24x32xf32>
    %23 = vector.shape_cast %22 : vector<1x24x32xf32> to vector<24x32xf32>
    %24 = vector.shape_cast %21 : vector<24x32xf32> to vector<1x24x32xf32>
    tpu.vector_store %arg2[%c4_19, %c0_20, %c0_21], %24 {strides = array<i32>} : memref<8x24x32xf32, #tpu.memory_space<vmem>>, vector<1x24x32xf32>,
    %c0_22 = arith.constant 0 : index
    %c2_23 = arith.constant 2 : index
    %c0_24 = arith.constant 0 : index
    %25 = vector.load %arg1[%c0_22, %c2_23, %c0_24] : memref<1x31x32xf32, #tpu.memory_space<vmem>>, vector<1x24x32xf32>
    %26 = vector.shape_cast %25 : vector<1x24x32xf32> to vector<24x32xf32>
    %c5_25 = arith.constant 5 : index
    %c0_26 = arith.constant 0 : index
    %c0_27 = arith.constant 0 : index
    %27 = vector.load %arg2[%c5_25, %c0_26, %c0_27] : memref<8x24x32xf32, #tpu.memory_space<vmem>>, vector<1x24x32xf32>
    %28 = vector.shape_cast %27 : vector<1x24x32xf32> to vector<24x32xf32>
    %29 = vector.shape_cast %26 : vector<24x32xf32> to vector<1x24x32xf32>
    tpu.vector_store %arg2[%c5_25, %c0_26, %c0_27], %29 {strides = array<i32>} : memref<8x24x32xf32, #tpu.memory_space<vmem>>, vector<1x24x32xf32>,
    %c0_28 = arith.constant 0 : index
    %c1_29 = arith.constant 1 : index
    %c0_30 = arith.constant 0 : index
    %30 = vector.load %arg1[%c0_28, %c1_29, %c0_30] : memref<1x31x32xf32, #tpu.memory_space<vmem>>, vector<1x24x32xf32>
    %31 = vector.shape_cast %30 : vector<1x24x32xf32> to vector<24x32xf32>
    %c6_31 = arith.constant 6 : index
    %c0_32 = arith.constant 0 : index
    %c0_33 = arith.constant 0 : index
    %32 = vector.load %arg2[%c6_31, %c0_32, %c0_33] : memref<8x24x32xf32, #tpu.memory_space<vmem>>, vector<1x24x32xf32>
    %33 = vector.shape_cast %32 : vector<1x24x32xf32> to vector<24x32xf32>
    %34 = vector.shape_cast %31 : vector<24x32xf32> to vector<1x24x32xf32>
    tpu.vector_store %arg2[%c6_31, %c0_32, %c0_33], %34 {strides = array<i32>} : memref<8x24x32xf32, #tpu.memory_space<vmem>>, vector<1x24x32xf32>,
    %c0_34 = arith.constant 0 : index
    %c0_35 = arith.constant 0 : index
    %c0_36 = arith.constant 0 : index
    %35 = vector.load %arg1[%c0_34, %c0_35, %c0_36] : memref<1x31x32xf32, #tpu.memory_space<vmem>>, vector<1x24x32xf32>
    %36 = vector.shape_cast %35 : vector<1x24x32xf32> to vector<24x32xf32>
    %c7_37 = arith.constant 7 : index
    %c0_38 = arith.constant 0 : index
    %c0_39 = arith.constant 0 : index
    %37 = vector.load %arg2[%c7_37, %c0_38, %c0_39] : memref<8x24x32xf32, #tpu.memory_space<vmem>>, vector<1x24x32xf32>
    %38 = vector.shape_cast %37 : vector<1x24x32xf32> to vector<24x32xf32>
    %39 = vector.shape_cast %36 : vector<24x32xf32> to vector<1x24x32xf32>
    tpu.vector_store %arg2[%c7_37, %c0_38, %c0_39], %39 {strides = array<i32>} : memref<8x24x32xf32, #tpu.memory_space<vmem>>, vector<1x24x32xf32>,
    return
  }
  func.func @transform_0(%arg0: i32) -> (i32, i32, i32) {
    %c0_i32 = arith.constant 0 : i32
    %c0_i32_0 = arith.constant 0 : i32
    %c0_i32_1 = arith.constant 0 : i32
    return %arg0, %c0_i32, %c0_i32_0 : i32, i32, i32
  }
  func.func @transform_1(%arg0: i32) -> (i32, i32, i32) {
    %c0_i32 = arith.constant 0 : i32
    %c0_i32_0 = arith.constant 0 : i32
    %c0_i32_1 = arith.constant 0 : i32
    return %arg0, %c0_i32, %c0_i32_0 : i32, i32, i32
  }
}

</mosaic_0001>

<llo_original>
// kernel: tpu_custom_call.1
$region0: #{tpu_custom_call.1}
  #allocation0 [shape = 'u32[]', space=smem, size = 0x4, offset = 0x4, fixed_abs, tag = 'smem constant byte address 0x4 - core index']
  #allocation1 [shape = 'u32[144,128]{1,0:T(1,128)}', space=vmem, size = 0x12000, scoped, tag = 'internal scratch']
  %s0 = inlined_call_operand.vmem [shape: f32[2,31,32], index: 0, kind: input, shape index: {}]
  %s1 = inlined_call_operand.hbm [shape: f32[16,24,32], index: 1, kind: output, shape index: {}]
  %s2 = sld [smem:[#allocation0]]
  $region37: #{tpu_custom_call.1} parent=0
    _
  %s4 = ssub.s32 1, %s2
  %s5 = scalar_select 0, %s4, %s2
  $region1: #{tpu_custom_call.1} parent=0
    #allocation2 [shape = 'u8[196608]{0}', space=vmem, size = 0x30000, scoped, tag = 'output window, operand 0']
    #allocation3 [shape = 's32[2]{0}', space=sflag, size = 0x8, scoped, tag = 'scoped memory for tpu_custom_call.1']
    %6 = vsyncpa [#allocation3], 0
    %s7 = scalar_lea.sflag [#allocation3], 1
    %8 = vsyncpa %s7, 0
    loop: start=0, step=1, limit=4
    $region2: #{tpu_custom_call.1} parent=1 // loop_pre_header
      _
    $region3: #{tpu_custom_call.1} parent=1 // loop_header
      %s10 = sphi 0, %s14
      %p11 = scmp.ge.s32.totalorder %s10, 4
      %s20 = sphi 0, %s22
      %s23 = sphi 0, %s20
      %s24 = sphi 0, %s23
      %s40 = sphi 0, %s24
      %s46 = sphi 0, %s48
      %s49 = sphi 0, %s46
      %s50 = sphi 0, %s49
      %s66 = sphi 0, %s50
    $region4: #{tpu_custom_call.1} parent=1 // loop_header_branch
      %13 = sbr.rel (%p11) target = $region8
    $region5: #{tpu_custom_call.1} parent=1 // loop_body
      %s15 = ssub.s32 %s10, 1
      %s16 = ssub.s32 %s10, 2
      %s17 = sadd.s32 %s10, 1
      %s18 = ssub.s32 %s10, %s17
      %p19 = scmp.eq.s32.totalorder %s18, 0
      %s21 = sadd.s32 %s20, 1
      %s22 = scalar_select %p19, %s20, %s21
      %p25 = pneg %p19
      %p26 = scmp.eq.s32.totalorder %s10, 1
      %p27 = por %p25, %p26
      %p28 = scmp.ne.s32.totalorder %s20, %s23
      %p29 = scmp.eq.s32.totalorder %s10, 0
      %p30 = por %p28, %p29
      %p31 = scmp.ne.s32.totalorder %s20, %s23
      %p32 = scmp.eq.s32.totalorder %s15, 1
      %p33 = por %p31, %p32
      %p34 = scmp.ne.s32.totalorder %s23, %s24
      %p35 = scmp.eq.s32.totalorder %s15, 0
      %p36 = por %p34, %p35
      %p37 = scmp.ne.s32.totalorder %s23, %s24
      %p38 = scmp.eq.s32.totalorder %s16, 1
      %p39 = por %p37, %p38
      %p41 = scmp.ne.s32.totalorder %s24, %s40
      %p42 = scmp.eq.s32.totalorder %s16, 0
      %p43 = por %p41, %p42
      %s44 = ssub.s32 %s10, %s17
      %p45 = scmp.eq.s32.totalorder %s44, 0
      %s47 = sadd.s32 %s46, 1
      %s48 = scalar_select %p45, %s46, %s47
      %p51 = pneg %p45
      %p52 = scmp.eq.s32.totalorder %s10, 1
      %p53 = por %p51, %p52
      %p54 = scmp.ne.s32.totalorder %s46, %s49
      %p55 = scmp.eq.s32.totalorder %s10, 0
      %p56 = por %p54, %p55
      %p57 = scmp.ne.s32.totalorder %s46, %s49
      %p58 = scmp.eq.s32.totalorder %s15, 1
      %p59 = por %p57, %p58
      %p60 = scmp.ne.s32.totalorder %s49, %s50
      %p61 = scmp.eq.s32.totalorder %s15, 0
      %p62 = por %p60, %p61
      %p63 = scmp.ne.s32.totalorder %s49, %s50
      %p64 = scmp.eq.s32.totalorder %s16, 1
      %p65 = por %p63, %p64
      %p67 = scmp.ne.s32.totalorder %s50, %s66
      %p68 = scmp.eq.s32.totalorder %s16, 0
      %p69 = por %p67, %p68
      %p70 = scmp.le.s32.totalorder 1, %s10
      %p71 = scmp.lt.s32.totalorder %s10, 3
      %p72 = pnand %p70, %p71
      %p73 = pneg %p72
      // Predicated region
      $region9: #{tpu_custom_call.1} parent=5 // pred_check
        _
      $region10: #{tpu_custom_call.1} parent=5 // pred_check_branch
        %75 = sbr.rel (%p72) target = $region12
      $region11: #{tpu_custom_call.1} parent=5 // pred_region
        %s76 = ssub.s32 %s10, 1
      $region12: #{tpu_custom_call.1} parent=5 // pred_fallthru
        _
      %p77 = scmp.lt.s32.totalorder %s10, 2
      // Predicated region
      $region13: #{tpu_custom_call.1} parent=5 // pred_check
        %p78 = pneg %p77
      $region14: #{tpu_custom_call.1} parent=5 // pred_check_branch
        %80 = sbr.rel (%p78) target = $region16
      $region15: #{tpu_custom_call.1} parent=5 // pred_region
        // Predicated region
        $region17: #{tpu_custom_call.1} parent=15 // pred_check
          %p81 = pneg %p30
        $region18: #{tpu_custom_call.1} parent=15 // pred_check_branch
          %83 = sbr.rel (%p81) target = $region20
        $region19: #{tpu_custom_call.1} parent=15 // pred_region
          %p84 = scmp.lt.s32.totalorder %s10, 1
          %s85 = scalar_select %p84, %s10, 1
          %s86 = smul.addr %s85, 4
          %s87 = smul.addr %s86, 8
          %s88 = scalar_lea.vmem %s0, %s87
        $region20: #{tpu_custom_call.1} parent=15 // pred_fallthru
          _
      $region16: #{tpu_custom_call.1} parent=5 // pred_fallthru
        _
      %p89 = scmp.le.s32.totalorder 1, %s10
      %p90 = scmp.lt.s32.totalorder %s10, 3
      %p91 = pnand %p89, %p90
      %p92 = pneg %p91
      // Predicated region
      $region21: #{tpu_custom_call.1} parent=5 // pred_check
        _
      $region22: #{tpu_custom_call.1} parent=5 // pred_check_branch
        %94 = sbr.rel (%p91) target = $region24
      $region23: #{tpu_custom_call.1} parent=5 // pred_region
        %s95 = ssub.s32 %s10, 1
        %p96 = scmp.lt.s32.totalorder %s15, 1
        %s97 = scalar_select %p96, %s15, 1
        %s98 = smul.addr %s97, 4
        %s99 = smul.addr %s98, 8
        %s100 = scalar_lea.vmem %s0, %s99
        %p101 = pneg %p36
        %p102 = pneg %p33
        %p103 = pneg %p62
        %p104 = pneg %p59
        %s105 = sand.u32 %s49, 1
        %s106 = scalar_lea.sflag [#allocation3], %s105
        %s107 = sand.u32 %s49, 1
        %s108 = smul.addr %s107, 192
        %s109 = scalar_lea.vmem [#allocation2], %s108
        %p110 = scmp.lt.s32.totalorder %s15, 1
        %s111 = scalar_select %p110, %s15, 1
        %s112 = smul.addr %s111, 4
        %s113 = smul.addr %s112, 8
        %s114 = scalar_lea.vmem %s0, %s113
        %s115 = smul.u32 8, %s15
        %v116 = vld [vmem:[%s114 + $0x7] sm:$0xff]
        %v117 = vld [vmem:[%s114 + $0xf] sm:$0xff]
        %v118 = vld [vmem:[%s114 + $0x17] sm:$0xff]
        %vm119 = vcmask 261120
        %120 = vst.msk [vmem:[%s109] sm:$0xff] %vm119, %v116
        %121 = vst.msk [vmem:[%s109 + $0x8] sm:$0xff] %vm119, %v117
        %122 = vst.msk [vmem:[%s109 + $0x10] sm:$0xff] %vm119, %v118
        %v123 = vld [vmem:[%s114 + $0x6] sm:$0xff]
        %v124 = vld [vmem:[%s114 + $0xe] sm:$0xff]
        %v125 = vld [vmem:[%s114 + $0x16] sm:$0xff]
        %s126 = scalar_lea.vmem %s109, 24 [#allocation2]
        %127 = vst.msk [vmem:[%s126] sm:$0xff] %vm119, %v123
        %128 = vst.msk [vmem:[%s126 + $0x8] sm:$0xff] %vm119, %v124
        %129 = vst.msk [vmem:[%s126 + $0x10] sm:$0xff] %vm119, %v125
        %v130 = vld [vmem:[%s114 + $0x5] sm:$0xff]
        %v131 = vld [vmem:[%s114 + $0xd] sm:$0xff]
        %v132 = vld [vmem:[%s114 + $0x15] sm:$0xff]
        %s133 = scalar_lea.vmem %s109, 48 [#allocation2]
        %134 = vst.msk [vmem:[%s133] sm:$0xff] %vm119, %v130
        %135 = vst.msk [vmem:[%s133 + $0x8] sm:$0xff] %vm119, %v131
        %136 = vst.msk [vmem:[%s133 + $0x10] sm:$0xff] %vm119, %v132
        %v137 = vld [vmem:[%s114 + $0x4] sm:$0xff]
        %v138 = vld [vmem:[%s114 + $0xc] sm:$0xff]
        %v139 = vld [vmem:[%s114 + $0x14] sm:$0xff]
        %s140 = scalar_lea.vmem %s109, 72 [#allocation2]
        %141 = vst.msk [vmem:[%s140] sm:$0xff] %vm119, %v137
        %142 = vst.msk [vmem:[%s140 + $0x8] sm:$0xff] %vm119, %v138
        %143 = vst.msk [vmem:[%s140 + $0x10] sm:$0xff] %vm119, %v139
        %v144 = vld [vmem:[%s114 + $0x3] sm:$0xff]
        %v145 = vld [vmem:[%s114 + $0xb] sm:$0xff]
        %v146 = vld [vmem:[%s114 + $0x13] sm:$0xff]
        %s147 = scalar_lea.vmem %s109, 96 [#allocation2]
        %148 = vst.msk [vmem:[%s147] sm:$0xff] %vm119, %v144
        %149 = vst.msk [vmem:[%s147 + $0x8] sm:$0xff] %vm119, %v145
        %150 = vst.msk [vmem:[%s147 + $0x10] sm:$0xff] %vm119, %v146
        %v151 = vld [vmem:[%s114 + $0x2] sm:$0xff]
        %v152 = vld [vmem:[%s114 + $0xa] sm:$0xff]
        %v153 = vld [vmem:[%s114 + $0x12] sm:$0xff]
        %s154 = scalar_lea.vmem %s109, 120 [#allocation2]
        %155 = vst.msk [vmem:[%s154] sm:$0xff] %vm119, %v151
        %156 = vst.msk [vmem:[%s154 + $0x8] sm:$0xff] %vm119, %v152
        %157 = vst.msk [vmem:[%s154 + $0x10] sm:$0xff] %vm119, %v153
        %v158 = vld [vmem:[%s114 + $0x1] sm:$0xff]
        %v159 = vld [vmem:[%s114 + $0x9] sm:$0xff]
        %v160 = vld [vmem:[%s114 + $0x11] sm:$0xff]
        %s161 = scalar_lea.vmem %s109, 144 [#allocation2]
        %162 = vst.msk [vmem:[%s161] sm:$0xff] %vm119, %v158
        %163 = vst.msk [vmem:[%s161 + $0x8] sm:$0xff] %vm119, %v159
        %164 = vst.msk [vmem:[%s161 + $0x10] sm:$0xff] %vm119, %v160
        %v165 = vld [vmem:[%s114] sm:$0xff]
        %v166 = vld [vmem:[%s114 + $0x8] sm:$0xff]
        %v167 = vld [vmem:[%s114 + $0x10] sm:$0xff]
        %s168 = scalar_lea.vmem %s109, 168 [#allocation2]
        %169 = vst.msk [vmem:[%s168] sm:$0xff] %vm119, %v165
        %170 = vst.msk [vmem:[%s168 + $0x8] sm:$0xff] %vm119, %v166
        %171 = vst.msk [vmem:[%s168 + $0x10] sm:$0xff] %vm119, %v167
        %s172 = sand.u32 %s49, 1
        %s173 = scalar_lea.sflag [#allocation3], %s172
        %s174 = sand.u32 %s49, 1
        %s175 = smul.addr %s174, 192
        %s176 = scalar_lea.vmem [#allocation2], %s175
        // Predicated region
        $region25: #{tpu_custom_call.1} parent=23 // pred_check
          %p177 = pneg %p59
        $region26: #{tpu_custom_call.1} parent=23 // pred_check_branch
          %179 = sbr.rel (%p177) target = $region28
        $region27: #{tpu_custom_call.1} parent=23 // pred_region
          %s180 = smul.u32 8, %s15
          %s182 = ssub.s32 3072, 3072
          %183 = vsyncadd %s173, %s182
          %s184 = smul.addr %s180, 3
          %s185 = smul.addr %s184, 128
          %s186 = scalar_lea.hbm %s1, %s185
          %s187 = sshll.u32 %s176, 4
          %s188 = int_to_ptr.vmem [resolvable:$true] %s187
          %193 = dma.vmem_to_hbm [thread:$0]  %s188, 3072, %s186, %s173, 128, 128, 8
        $region28: #{tpu_custom_call.1} parent=23 // pred_fallthru
          _
      $region24: #{tpu_custom_call.1} parent=5 // pred_fallthru
        _
      %p194 = scmp.le.s32.totalorder 2, %s10
      // Predicated region
      $region29: #{tpu_custom_call.1} parent=5 // pred_check
        %p195 = pneg %p194
      $region30: #{tpu_custom_call.1} parent=5 // pred_check_branch
        %197 = sbr.rel (%p195) target = $region32
      $region31: #{tpu_custom_call.1} parent=5 // pred_region
        %s198 = ssub.s32 %s10, 2
        // Predicated region
        $region33: #{tpu_custom_call.1} parent=31 // pred_check
          %p199 = pneg %p65
        $region34: #{tpu_custom_call.1} parent=31 // pred_check_branch
          %201 = sbr.rel (%p199) target = $region36
        $region35: #{tpu_custom_call.1} parent=31 // pred_region
          %s202 = sand.u32 %s50, 1
          %s203 = scalar_lea.sflag [#allocation3], %s202
          %s204 = sand.u32 %s50, 1
          %s205 = smul.addr %s204, 192
          %s206 = scalar_lea.vmem [#allocation2], %s205
          %207 = dma.done %s203, 3072
        $region36: #{tpu_custom_call.1} parent=31 // pred_fallthru
          _
      $region32: #{tpu_custom_call.1} parent=5 // pred_fallthru
        _
    $region6: #{tpu_custom_call.1} parent=1 // loop_footer
      %s14 = sadd.s32 1, %s10
    $region7: #{tpu_custom_call.1} parent=1 // loop_footer_branch
      %9 = sbr.rel target = $region3
    $region8: #{tpu_custom_call.1} parent=1 // loop_exit
      _
    %208 = vsyncpa [#allocation3], 1
    %s209 = scalar_lea.sflag [#allocation3], 1
    %210 = vsyncpa %s209, 1

</llo_original>
